<compile_context>
chip_gen: v7x
topology: tpu7x:2x2x1
jax: 0.10.0
libtpu: 0.0.40
codegen_flags: <defaults>
</compile_context>

<pallas_src>
import numpy as np
import jax
import jax.numpy as jnp
from jax.experimental import pallas as pl
from jax.experimental.pallas import tpu as pltpu


_BLUR_SCALE = 1.0 / 16.0  # sum of ([1,2,1] outer [1,2,1]); filter is normalized


def make_blur_filter(num_channels, f=(1, 2, 1), normalize=True, flip=False):
    """Deterministically build the (C, 1, 3, 3) buffer exactly like Blur2D.__init__."""
    f = np.array(f, dtype=np.float32)
    if f.ndim == 1:
        f = f[:, np.newaxis] * f[np.newaxis, :]
    assert f.ndim == 2
    if normalize:
        f /= np.sum(f)
    if flip:
        f = f[::-1, ::-1]
    f = f[np.newaxis, np.newaxis, :, :]                  # (1, 1, 3, 3)
    f = np.tile(f, (num_channels, 1, 1, 1))              # (C, 1, 3, 3)
    return jnp.asarray(f)


# ---------------------------------------------------------------------------
# Hardware-aware configuration helpers (all failure-tolerant).
# ---------------------------------------------------------------------------

def _device_kind():
    try:
        return jax.devices()[0].device_kind.lower()
    except Exception:
        return ""


def _is_v7x(kind):
    return ("v7" in kind) or ("7x" in kind)


def _vmem_params():
    """(tile working-set budget, scoped vmem_limit_bytes), generation-aware."""
    cap = None
    try:
        cap = int(pltpu.get_tpu_info().vmem_capacity_bytes)
    except Exception:
        cap = None
    if not cap:
        cap = (64 if _is_v7x(_device_kind()) else 128) * 1024 * 1024
    limit = min(cap // 2, 64 * 1024 * 1024)     # 32 MiB on v7x, 64 MiB on v5e/v6e
    budget = min(cap // 3, 44 * 1024 * 1024)    # ~21 MiB on v7x, ~42 MiB on v5e/v6e
    return budget, limit


def _plane_semantics():
    """Grid-axis semantics for the (embarrassingly parallel) plane axis."""
    if _is_v7x(_device_kind()) and hasattr(pltpu, "CORE_PARALLEL"):
        return pltpu.CORE_PARALLEL      # actually shard across v7x's two TensorCores
    return "parallel"


def _pick_compute_dtype(x_dtype):
    """bf16 horizontal pass only where the VPU has bf16 ALUs (v6e/v7x)."""
    kind = _device_kind()
    if jnp.dtype(x_dtype) == jnp.dtype(jnp.bfloat16) and ("v6" in kind or _is_v7x(kind)):
        return jnp.bfloat16
    return jnp.float32


def _call_with_fallback(build, preferred, fallback, args):
    """Call build(preferred)(*args); on a compile/lowering failure retry with
    the known-good fallback dimension_semantics."""
    try:
        return build(preferred)(*args)
    except Exception:
        if tuple(preferred) == tuple(fallback):
            raise
        return build(fallback)(*args)


def _check_filter_contract(f_buffer):
    f = np.asarray(jax.device_get(f_buffer), dtype=np.float32)
    expected = (np.outer([1.0, 2.0, 1.0], [1.0, 2.0, 1.0]) / 16.0).astype(np.float32)
    if f.ndim != 4 or f.shape[1:] != (1, 3, 3) or not np.allclose(
            f, expected[None, None], atol=1e-6):
        raise ValueError(
            "blur2d_pallas bakes in the shared [1,2,1]x[1,2,1]/16 Blur2D filter; "
            "the supplied buffer does not match (flip / non-normalized / custom "
            "taps are not supported by this kernel).")


# ---------------------------------------------------------------------------
# Primary kernel: planes flattened into the lane axis, block = (P, H*W).
# ---------------------------------------------------------------------------

def _make_flat_kernel(h, w, compute_dtype):
    hw = h * w
    s_l, s_r = 1 % hw, (hw - 1) % hw          # left / right neighbour rolls
    s_u, s_d = w % hw, (hw - w) % hw          # up / down neighbour rolls

    def kernel(m_ref, x_ref, o_ref):
        # x_ref / o_ref: (P, H*W) -- P independent planes, spatial dims in lanes.
        x = x_ref[...].astype(compute_dtype)          # single cast per tile
        ml = m_ref[0:1, :]   # left-neighbour-valid  (col > 0)
        mr = m_ref[1:2, :]   # right-neighbour-valid (col < W-1)
        mu = m_ref[2:3, :]   # up-neighbour-valid    (row > 0)
        md = m_ref[3:4, :]   # down-neighbour-valid  (row < H-1)

        # Horizontal [1, 2, 1]: lane rolls (XLU slot), plane-border wrap killed
        # by the {0,1} masks (reproduces conv2d padding=1).
        t = (pltpu.roll(x, shift=s_l, axis=1) * ml
             + 2 * x
             + pltpu.roll(x, shift=s_r, axis=1) * mr).astype(jnp.float32)
        # Vertical [1, 2, 1]: rolls by +-W along the flattened lane axis;
        # f32 accumulation, single scale, single store.
        y = (pltpu.roll(t, shift=s_u, axis=1) * mu
             + 2.0 * t
             + pltpu.roll(t, shift=s_d, axis=1) * md)
        o_ref[...] = (y * _BLUR_SCALE).astype(o_ref.dtype)

    return kernel


def _choose_plane_batch(n_planes, hw, itemsize, budget):
    """Planes per grid step for the flattened kernel.

    Accounts for double-buffered in/out tiles, ~5 f32 intermediates the body
    materializes, and the resident mask tile.  Returns 0 if not even the
    smallest legal block fits (caller switches to the row-band fallback)."""
    budget = budget - 2 * 8 * hw * 4               # resident (4,HW) mask tile, sublane-padded + dbl-buffered
    per_plane = (2 + 2) * hw * itemsize + 5 * hw * 4
    if budget < per_plane:
        return 0
    cap = int(budget // per_plane)
    if cap >= n_planes:
        return n_planes                            # full dim: always a legal block dim
    pref = max(8, 32 // max(1, itemsize))          # sublane pack: 8 f32 / 16 bf16 / 32 i8
    if cap >= pref:
        return (cap // pref) * pref
    if cap >= 8:
        return (cap // 8) * 8
    return 0


# ---------------------------------------------------------------------------
# Fallback kernel for planes too large for VMEM: row bands with explicit halo.
# ---------------------------------------------------------------------------

def _make_band_kernel(w, compute_dtype):
    s_l, s_r = 1 % w, (w - 1) % w

    def kernel(m_ref, a_ref, b_ref, c_ref, o_ref):
        # a/b/c: (1, Hc, W) row bands of the zero-padded plane, shifted by
        # 0/1/2 rows -> per output row they hold the up / centre / down rows.
        ml = m_ref[0:1, :].reshape(1, 1, w)
        mr = m_ref[1:2, :].reshape(1, 1, w)

        def hpass(ref):
            v = ref[...].astype(compute_dtype)
            return (pltpu.roll(v, shift=s_l, axis=2) * ml
                    + 2 * v
                    + pltpu.roll(v, shift=s_r, axis=2) * mr).astype(jnp.float32)

        t_up, t_mid, t_dn = hpass(a_ref), hpass(b_ref), hpass(c_ref)
        o_ref[...] = ((t_up + 2.0 * t_mid + t_dn) * _BLUR_SCALE).astype(o_ref.dtype)

    return kernel


def _blur2d_banded(xf3, compute_dtype, budget, limit, plane_sem):
    """Fallback for planes whose flattened working set does not fit VMEM:
    grid over (plane, row-band); the 1-row vertical halo is supplied by three
    row-shifted views of a zero-padded copy (extra HBM traffic, but this path
    only triggers when a whole plane cannot fit in VMEM)."""
    n_planes, h, w = xf3.shape
    itemsize = xf3.dtype.itemsize
    per_row = (3 * 2 + 2) * w * itemsize + 4 * w * 4
    cap = max(1, int(budget // per_row))
    hc = h if cap >= h else max(8, (cap // 8) * 8)

    xp = jnp.pad(xf3, ((0, 0), (1, 1), (0, 0)))
    x_up, x_mid, x_dn = xp[:, 0:h, :], xp[:, 1:h + 1, :], xp[:, 2:h + 2, :]

    col = np.arange(w)
    masks = jnp.asarray(np.stack([col > 0, col < w - 1]).astype(np.float32),
                        dtype=compute_dtype)                      # (2, W)

    kernel = _make_band_kernel(w, compute_dtype)
    grid = (n_planes, pl.cdiv(h, hc))
    cost = pl.CostEstimate(flops=18 * n_planes * h * w, transcendentals=0,
                           bytes_accessed=4 * n_planes * h * w * itemsize)

    def band_spec():
        return pl.BlockSpec((1, hc, w), lambda p, i: (p, i, 0))

    def build(sems):
        return pl.pallas_call(
            kernel,
            out_shape=jax.ShapeDtypeStruct((n_planes, h, w), xf3.dtype),
            grid=grid,
            in_specs=[pl.BlockSpec((2, w), lambda p, i: (0, 0)),
                      band_spec(), band_spec(), band_spec()],
            out_specs=band_spec(),
            compiler_params=pltpu.CompilerParams(
                dimension_semantics=sems, vmem_limit_bytes=limit),
            cost_estimate=cost,
        )

    return _call_with_fallback(build, (plane_sem, "arbitrary"),
                               ("parallel", "arbitrary"),
                               (masks, x_up, x_mid, x_dn))


# ---------------------------------------------------------------------------
# Public wrapper.
# ---------------------------------------------------------------------------

def blur2d_pallas(x, f_buffer=None, force_banded=False):
    """Blur2D forward: x (N, C, H, W) -> (N, C, H, W), same dtype.

    Every channel uses the identical constant ([1,2,1] outer [1,2,1]) / 16
    filter (the Blur2D contract inside SynthNetwork); pass the module's
    buffer via `f_buffer` to have that contract verified."""
    if f_buffer is not None:
        _check_filter_contract(f_buffer)

    N, C, H, W = x.shape
    n_planes, hw = N * C, H * W
    itemsize = x.dtype.itemsize
    budget, limit = _vmem_params()
    compute_dtype = _pick_compute_dtype(x.dtype)
    plane_sem = _plane_semantics()

    P = 0 if force_banded else _choose_plane_batch(n_planes, hw, itemsize, budget)
    if P == 0:
        out = _blur2d_banded(x.reshape(n_planes, H, W), compute_dtype,
                             budget, limit, plane_sem)
        return out.reshape(N, C, H, W)

    xf = x.reshape(n_planes, hw)                   # contiguous, free reshape

    col = np.arange(hw) % W
    row = np.arange(hw) // W
    masks = jnp.asarray(
        np.stack([col > 0, col < W - 1, row > 0, row < H - 1]).astype(np.float32),
        dtype=compute_dtype)                       # (4, H*W) {0,1} border masks

    kernel = _make_flat_kernel(H, W, compute_dtype)
    grid = (pl.cdiv(n_planes, P),)                 # partial last block is fine: planes independent
    cost = pl.CostEstimate(flops=12 * n_planes * hw, transcendentals=0,
                           bytes_accessed=2 * n_planes * hw * itemsize)

    def build(sems):
        return pl.pallas_call(
            kernel,
            out_shape=jax.ShapeDtypeStruct((n_planes, hw), x.dtype),
            grid=grid,
            in_specs=[pl.BlockSpec((4, hw), lambda i: (0, 0)),    # resident mask tile
                      pl.BlockSpec((P, hw), lambda i: (i, 0))],
            out_specs=pl.BlockSpec((P, hw), lambda i: (i, 0)),
            compiler_params=pltpu.CompilerParams(
                dimension_semantics=sems, vmem_limit_bytes=limit),
            cost_estimate=cost,
        )

    out = _call_with_fallback(build, (plane_sem,), ("parallel",), (masks, xf))
    return out.reshape(N, C, H, W)


# ---------------------------------------------------------------------------
# Pure-JAX reference and self-test.
# ---------------------------------------------------------------------------

def _blur2d_ref(x, f_buffer):
    """Plain-JAX reference: general depthwise conv2d, padding=1 (matches
    F.conv2d(x, f, groups=C, padding=1)), using the per-channel buffer."""
    N, C, H, W = x.shape
    xp = jnp.pad(x, ((0, 0), (0, 0), (1, 1), (1, 1)))
    out = jnp.zeros_like(x)
    for ki in range(3):
        for kj in range(3):
            taps = f_buffer[:, 0, ki, kj].reshape(1, C, 1, 1)
            out = out + taps * xp[:, :, ki:ki + H, kj:kj + W]
    return out


if __name__ == "__main__":
    N, C, H, W = 2, 4, 16, 16
    key = jax.random.PRNGKey(0)
    x = jax.random.normal(key, (N, C, H, W), dtype=jnp.float32)

    # Buffer exactly as Blur2D.__init__ builds it; blur2d_pallas verifies the
    # shared-constant-filter contract itself.
    f_buf = make_blur_filter(C, f=(1, 2, 1), normalize=True, flip=False)
    y_ref = _blur2d_ref(x, f_buf)

    # Primary (flattened, lane-dense) path.
    y = jax.block_until_ready(blur2d_pallas(x, f_buffer=f_buf))
    assert y.shape == (N, C, H, W)
    assert jnp.allclose(y, y_ref, atol=1e-5, rtol=1e-5), "flat-kernel mismatch vs reference"

    # Also exercise the large-plane row-band fallback path at the small shape.
    y_band = jax.block_until_ready(blur2d_pallas(x, f_buffer=f_buf, force_banded=True))
    assert jnp.allclose(y_band, y_ref, atol=1e-5, rtol=1e-5), "band-kernel mismatch vs reference"

    print("KERNEL_OK")
</pallas_src>

<mosaic_0001>
module attributes {stable_mosaic.version = 11 : i64} {
  func.func @kernel(%arg0: i32, %arg1: memref<4x256xf32, #tpu.memory_space<vmem>>, %arg2: memref<8x256xf32, #tpu.memory_space<vmem>>, %arg3: memref<8x256xf32, #tpu.memory_space<vmem>>) attributes {dimension_semantics = [#tpu.dimension_semantics<parallel>], iteration_bounds = array<i64: 1>, scalar_prefetch = 0 : i64, scratch_operands = 0 : i64, tpu.core_type = #tpu.core_type<tc>, window_params = [{pipeline_mode = #tpu.pipeline_mode<synchronous>, transform_indices = @transform_0, window_bounds = array<i64: 4, 256>}, {transform_indices = @transform_1, window_bounds = array<i64: 8, 256>}, {transform_indices = @transform_2, window_bounds = array<i64: 8, 256>}]} {
    %c0 = arith.constant 0 : index
    %c0_0 = arith.constant 0 : index
    %0 = vector.load %arg2[%c0, %c0_0] : memref<8x256xf32, #tpu.memory_space<vmem>>, vector<8x256xf32>
    %c0_1 = arith.constant 0 : index
    %c0_2 = arith.constant 0 : index
    %1 = vector.load %arg1[%c0_1, %c0_2] : memref<4x256xf32, #tpu.memory_space<vmem>>, vector<1x256xf32>
    %c1 = arith.constant 1 : index
    %c0_3 = arith.constant 0 : index
    %2 = vector.load %arg1[%c1, %c0_3] : memref<4x256xf32, #tpu.memory_space<vmem>>, vector<1x256xf32>
    %c2 = arith.constant 2 : index
    %c0_4 = arith.constant 0 : index
    %3 = vector.load %arg1[%c2, %c0_4] : memref<4x256xf32, #tpu.memory_space<vmem>>, vector<1x256xf32>
    %c3 = arith.constant 3 : index
    %c0_5 = arith.constant 0 : index
    %4 = vector.load %arg1[%c3, %c0_5] : memref<4x256xf32, #tpu.memory_space<vmem>>, vector<1x256xf32>
    %c1_i32 = arith.constant 1 : i32
    %5 = tpu.dynamic_rotate %0 by %c1_i32 dim 1 : vector<8x256xf32>, i32 -> vector<8x256xf32>
    %6 = vector.broadcast %1 : vector<1x256xf32> to vector<8x256xf32>
    %7 = arith.mulf %5, %6 : vector<8x256xf32>
    %cst = arith.constant 2.000000e+00 : f32
    %8 = vector.broadcast %cst : f32 to vector<8x256xf32>
    %9 = arith.mulf %8, %0 : vector<8x256xf32>
    %10 = arith.addf %7, %9 : vector<8x256xf32>
    %c255_i32 = arith.constant 255 : i32
    %11 = tpu.dynamic_rotate %0 by %c255_i32 dim 1 : vector<8x256xf32>, i32 -> vector<8x256xf32>
    %12 = vector.broadcast %2 : vector<1x256xf32> to vector<8x256xf32>
    %13 = arith.mulf %11, %12 : vector<8x256xf32>
    %14 = arith.addf %10, %13 : vector<8x256xf32>
    %c16_i32 = arith.constant 16 : i32
    %15 = tpu.dynamic_rotate %14 by %c16_i32 dim 1 : vector<8x256xf32>, i32 -> vector<8x256xf32>
    %16 = vector.broadcast %3 : vector<1x256xf32> to vector<8x256xf32>
    %17 = arith.mulf %15, %16 : vector<8x256xf32>
    %cst_6 = arith.constant 2.000000e+00 : f32
    %18 = vector.broadcast %cst_6 : f32 to vector<8x256xf32>
    %19 = arith.mulf %18, %14 : vector<8x256xf32>
    %20 = arith.addf %17, %19 : vector<8x256xf32>
    %c240_i32 = arith.constant 240 : i32
    %21 = tpu.dynamic_rotate %14 by %c240_i32 dim 1 : vector<8x256xf32>, i32 -> vector<8x256xf32>
    %22 = vector.broadcast %4 : vector<1x256xf32> to vector<8x256xf32>
    %23 = arith.mulf %21, %22 : vector<8x256xf32>
    %24 = arith.addf %20, %23 : vector<8x256xf32>
    %cst_7 = arith.constant 6.250000e-02 : f32
    %25 = vector.broadcast %cst_7 : f32 to vector<8x256xf32>
    %26 = arith.mulf %24, %25 : vector<8x256xf32>
    %c0_8 = arith.constant 0 : index
    %c0_9 = arith.constant 0 : index
    %27 = vector.load %arg3[%c0_8, %c0_9] : memref<8x256xf32, #tpu.memory_space<vmem>>, vector<8x256xf32>
    tpu.vector_store %arg3[%c0_8, %c0_9], %26 {strides = array<i32>} : memref<8x256xf32, #tpu.memory_space<vmem>>, vector<8x256xf32>,
    return
  }
  func.func @transform_0(%arg0: i32) -> (i32, i32) {
    %c0_i32 = arith.constant 0 : i32
    %c0_i32_0 = arith.constant 0 : i32
    %c0_i32_1 = arith.constant 0 : i32
    return %c0_i32, %c0_i32_0 : i32, i32
  }
  func.func @transform_1(%arg0: i32) -> (i32, i32) {
    %c0_i32 = arith.constant 0 : i32
    %c0_i32_0 = arith.constant 0 : i32
    return %arg0, %c0_i32 : i32, i32
  }
  func.func @transform_2(%arg0: i32) -> (i32, i32) {
    %c0_i32 = arith.constant 0 : i32
    %c0_i32_0 = arith.constant 0 : i32
    return %arg0, %c0_i32 : i32, i32
  }
}

</mosaic_0001>

<llo_original>
// kernel: tpu_custom_call.1
$region0: #{tpu_custom_call.1}
  #allocation0 [shape = 'u32[]', space=smem, size = 0x4, offset = 0x4, fixed_abs, tag = 'smem constant byte address 0x4 - core index']
  #allocation1 [shape = 'u32[144,128]{1,0:T(1,128)}', space=vmem, size = 0x12000, scoped, tag = 'internal scratch']
  %s0 = inlined_call_operand.hbm [shape: f32[4,256], index: 0, kind: input, shape index: {}]
  %s1 = inlined_call_operand.hbm [shape: f32[8,256], index: 1, kind: input, shape index: {}]
  %s2 = inlined_call_operand.hbm [shape: f32[8,256], index: 2, kind: output, shape index: {}]
  %s3 = sld [smem:[#allocation0]]
  $region26: #{tpu_custom_call.1} parent=0
    _
  %s5 = ssub.s32 1, %s3
  %s6 = scalar_select 0, %s5, %s3
  $region1: #{tpu_custom_call.1} parent=0
    #allocation2 [shape = 'u8[4096]{0}', space=vmem, size = 0x1000, scoped, tag = 'input window, operand 0, single buffered']
    #allocation3 [shape = 's32[1]{0}', space=sflag, size = 0x4, scoped, tag = 'scoped memory for tpu_custom_call.1']
    #allocation4 [shape = 's32[1]{0}', space=sflag, size = 0x4, scoped, tag = 'scoped memory for tpu_custom_call.1']
    #allocation5 [shape = 'u8[8192]{0}', space=vmem, size = 0x2000, scoped, tag = 'input window, operand 1, single buffered']
    #allocation6 [shape = 's32[1]{0}', space=sflag, size = 0x4, scoped, tag = 'scoped memory for tpu_custom_call.1']
    #allocation7 [shape = 'u8[8192]{0}', space=vmem, size = 0x2000, scoped, tag = 'output window, operand 0, single buffered']
    %7 = vsyncpa [#allocation3], 0
    %8 = vsyncpa [#allocation6], 0
    %9 = vsyncpa [#allocation4], 0
    // Predicated region
    $region2: #{tpu_custom_call.1} parent=1 // pred_check
      _
    $region3: #{tpu_custom_call.1} parent=1 // pred_check_branch
      %11 = sbr.rel (0) target = $region5
    $region4: #{tpu_custom_call.1} parent=1 // pred_region
      %s13 = ssub.s32 128, 128
      %14 = vsyncadd [#allocation3], %s13
      %s16 = sshll.u32 [#allocation2], 4
      %s17 = int_to_ptr.vmem [resolvable:$true] %s16
      %19 = dma.hbm_to_vmem [thread:$0]  %s0, 128, %s17, [#allocation3]
    $region5: #{tpu_custom_call.1} parent=1 // pred_fallthru
      _
    // Predicated region
    $region6: #{tpu_custom_call.1} parent=1 // pred_check
      _
    $region7: #{tpu_custom_call.1} parent=1 // pred_check_branch
      %21 = sbr.rel (0) target = $region9
    $region8: #{tpu_custom_call.1} parent=1 // pred_region
      %s23 = ssub.s32 256, 256
      %24 = vsyncadd [#allocation6], %s23
      %s26 = sshll.u32 [#allocation5], 4
      %s27 = int_to_ptr.vmem [resolvable:$true] %s26
      %29 = dma.hbm_to_vmem [thread:$0]  %s1, 256, %s27, [#allocation6]
    $region9: #{tpu_custom_call.1} parent=1 // pred_fallthru
      _
    // Predicated region
    $region10: #{tpu_custom_call.1} parent=1 // pred_check
      _
    $region11: #{tpu_custom_call.1} parent=1 // pred_check_branch
      %31 = sbr.rel (0) target = $region13
    $region12: #{tpu_custom_call.1} parent=1 // pred_region
      %32 = dma.done [#allocation3], 128
    $region13: #{tpu_custom_call.1} parent=1 // pred_fallthru
      _
    // Predicated region
    $region14: #{tpu_custom_call.1} parent=1 // pred_check
      _
    $region15: #{tpu_custom_call.1} parent=1 // pred_check_branch
      %34 = sbr.rel (0) target = $region17
    $region16: #{tpu_custom_call.1} parent=1 // pred_region
      %35 = dma.done [#allocation6], 256
    $region17: #{tpu_custom_call.1} parent=1 // pred_fallthru
      _
    %v36 = vld [vmem:[#allocation5] sm:$0xff]
    %v37 = vld [vmem:[#allocation5 + $0x8] sm:$0xff]
    %v38 = vld [vmem:[#allocation2] ss:$4 sm:$0x3]
    %s39 = scalar_lea.vmem [#allocation2], 1
    %v40 = vld [vmem:[%s39] ss:$4 sm:$0x3]
    %s41 = scalar_lea.vmem [#allocation2], 2
    %v42 = vld [vmem:[%s41] ss:$4 sm:$0x3]
    %s43 = scalar_lea.vmem [#allocation2], 3
    %v44 = vld [vmem:[%s43] ss:$4 sm:$0x3]
    %45 = vrot.lane.b32.xlu0 %v36, 1
    %v46 = vpop.permute.xlu0 %45
    %47 = vrot.lane.b32.xlu0 %v37, 1
    %v48 = vpop.permute.xlu0 %47
    %v49 = vlaneseq
    %v50 = vand.u32 %v49, 127
    %vm51 = vcmp.lt.s32.totalorder %v50, 1
    %v52 = vsel %vm51, %v46, %v48
    %v53 = vsel %vm51, %v48, %v46
    %v55 = vlaneseq
    %v56 = vshrl.u32 %v55, 7
    %v57 = vsub.s32 0, %v56
    %v58 = vrot.slane %v38, %v57
    %v59 = vlaneseq
    %v60 = vshrl.u32 %v59, 7
    %v61 = vsub.s32 1, %v60
    %v62 = vrot.slane %v38, %v61
    %v65 = vmul.f32 %v53, %v58
    %v66 = vmul.f32 %v52, %v62
    %v67 = vmul.f32 %v36, 2.0
    %v68 = vmul.f32 %v37, 2.0
    %v69 = vadd.f32 %v65, %v67
    %v70 = vadd.f32 %v66, %v68
    %71 = vrot.lane.b32.xlu0 %v36, 127
    %v72 = vpop.permute.xlu0 %71
    %73 = vrot.lane.b32.xlu0 %v37, 127
    %v74 = vpop.permute.xlu0 %73
    %vm75 = vcmp.lt.s32.totalorder %v50, 127
    %v76 = vsel %vm75, %v72, %v74
    %v77 = vsel %vm75, %v74, %v72
    %v79 = vlaneseq
    %v80 = vshrl.u32 %v79, 7
    %v81 = vsub.s32 0, %v80
    %v82 = vrot.slane %v40, %v81
    %v83 = vlaneseq
    %v84 = vshrl.u32 %v83, 7
    %v85 = vsub.s32 1, %v84
    %v86 = vrot.slane %v40, %v85
    %v89 = vmul.f32 %v76, %v82
    %v90 = vmul.f32 %v77, %v86
    %v91 = vadd.f32 %v69, %v89
    %v92 = vadd.f32 %v70, %v90
    %93 = vrot.lane.b32.xlu0 %v91, 16
    %v94 = vpop.permute.xlu0 %93
    %95 = vrot.lane.b32.xlu0 %v92, 16
    %v96 = vpop.permute.xlu0 %95
    %vm97 = vcmp.lt.s32.totalorder %v50, 16
    %v98 = vsel %vm97, %v94, %v96
    %v99 = vsel %vm97, %v96, %v94
    %v101 = vlaneseq
    %v102 = vshrl.u32 %v101, 7
    %v103 = vsub.s32 0, %v102
    %v104 = vrot.slane %v42, %v103
    %v105 = vlaneseq
    %v106 = vshrl.u32 %v105, 7
    %v107 = vsub.s32 1, %v106
    %v108 = vrot.slane %v42, %v107
    %v111 = vmul.f32 %v99, %v104
    %v112 = vmul.f32 %v98, %v108
    %v113 = vmul.f32 %v91, 2.0
    %v114 = vmul.f32 %v92, 2.0
    %v115 = vadd.f32 %v111, %v113
    %v116 = vadd.f32 %v112, %v114
    %117 = vrot.lane.b32.xlu0 %v91, 112
    %v118 = vpop.permute.xlu0 %117
    %119 = vrot.lane.b32.xlu0 %v92, 112
    %v120 = vpop.permute.xlu0 %119
    %vm121 = vcmp.lt.s32.totalorder %v50, 112
    %v122 = vsel %vm121, %v118, %v120
    %v123 = vsel %vm121, %v120, %v118
    %v125 = vlaneseq
    %v126 = vshrl.u32 %v125, 7
    %v127 = vsub.s32 0, %v126
    %v128 = vrot.slane %v44, %v127
    %v129 = vlaneseq
    %v130 = vshrl.u32 %v129, 7
    %v131 = vsub.s32 1, %v130
    %v132 = vrot.slane %v44, %v131
    %v135 = vmul.f32 %v122, %v128
    %v136 = vmul.f32 %v123, %v132
    %v137 = vadd.f32 %v115, %v135
    %v138 = vadd.f32 %v116, %v136
    %v139 = vmul.f32 %v137, 0.0625
    %v140 = vmul.f32 %v138, 0.0625
    %141 = vst [vmem:[#allocation7] sm:$0xff] %v139
    %142 = vst [vmem:[#allocation7 + $0x8] sm:$0xff] %v140
    // Predicated region
    $region18: #{tpu_custom_call.1} parent=1 // pred_check
      _
    $region19: #{tpu_custom_call.1} parent=1 // pred_check_branch
      %144 = sbr.rel (0) target = $region21
    $region20: #{tpu_custom_call.1} parent=1 // pred_region
      %s146 = ssub.s32 256, 256
      %147 = vsyncadd [#allocation4], %s146
      %s149 = sshll.u32 [#allocation7], 4
      %s150 = int_to_ptr.vmem [resolvable:$true] %s149
      %152 = dma.vmem_to_hbm [thread:$0]  %s150, 256, %s2, [#allocation4]
    $region21: #{tpu_custom_call.1} parent=1 // pred_fallthru
      _
    // Predicated region
    $region22: #{tpu_custom_call.1} parent=1 // pred_check
      _
    $region23: #{tpu_custom_call.1} parent=1 // pred_check_branch
      %154 = sbr.rel (0) target = $region25
    $region24: #{tpu_custom_call.1} parent=1 // pred_region
      %155 = dma.done [#allocation4], 256
    $region25: #{tpu_custom_call.1} parent=1 // pred_fallthru
      _
    %156 = vsyncpa [#allocation3], 1
    %157 = vsyncpa [#allocation6], 1
    %158 = vsyncpa [#allocation4], 1

</llo_original>
